<compile_context>
chip_gen: v7x
topology: tpu7x:2x2x1
jax: 0.10.0
libtpu: 0.0.40
codegen_flags: <defaults>
</compile_context>

<pallas_src>
import functools

import jax
import jax.numpy as jnp
from jax.experimental import pallas as pl
from jax.experimental.pallas import tpu as pltpu


def _round_up(a, b):
    return ((a + b - 1) // b) * b


def _int_pow(x, n):
    """x**n for a static int n >= 1 via square-and-multiply (VPU multiplies only)."""
    acc = None
    base = x
    while True:
        if n & 1:
            acc = base if acc is None else acc * base
        n >>= 1
        if n == 0:
            return acc
        base = base * base


def _int_root(m, n):
    """m**(1/n) for a static int n >= 1; m > 0 (or 0 after underflow)."""
    if n == 1:
        return m
    while n % 2 == 0:          # peel powers of two with sqrt (EUP, cheap)
        m = jnp.sqrt(m)
        n //= 2
    if n == 1:
        return m
    return jnp.exp(jnp.log(m) * (1.0 / n))   # tiny: TM elements per row tile


def _static_exponent(p, static_p):
    """Python int exponent for the VPU fast path, or None (general SMEM path)."""
    cand = static_p if static_p is not None else (p if isinstance(p, (int, float)) else None)
    if cand is None:
        return None
    cand = float(cand)
    if cand == round(cand) and 1.0 <= cand <= 16.0:
        return int(round(cand))
    return None


def _gem_kernel(s_ref, x_ref, o_ref, acc_ref, *, eps, int_p, hw, tk, inv_hw,
                bf16_compute):
    # s_ref:   SMEM (2,) = [p, 1/p]        (only read on the general path)
    # x_ref:   (TM, TK) VMEM input block
    # o_ref:   (1, 1, TM) VMEM output block (lane-dense)
    # acc_ref: (TM, 1) f32 VMEM accumulator, resident across the hw axis
    k = pl.program_id(1)

    @pl.when(k == 0)
    def _init():
        acc_ref[...] = jnp.zeros_like(acc_ref)

    if int_p is not None and bf16_compute and x_ref.dtype == jnp.bfloat16:
        # v6e/v7x: packed bf16 clamp + multiplies (2 elems per lane-op); widen
        # to f32 only for the accumulation so the kernel stays DMA-bound.
        x = jnp.maximum(x_ref[...], eps)
        xp = _int_pow(x, int_p).astype(jnp.float32)
    else:
        x = jnp.maximum(x_ref[...].astype(jnp.float32), eps)   # clamp(min=eps) > 0
        if int_p is not None:
            xp = _int_pow(x, int_p)                 # pure VPU, no EUP
        else:
            xp = jnp.exp(s_ref[0] * jnp.log(x))     # general exponent, x > 0

    if hw % tk != 0:
        # Tail block along the spatial axis: zero out-of-range lanes so garbage
        # does not pollute valid rows' sums (input is never padded in HBM).
        col = jax.lax.broadcasted_iota(jnp.int32, xp.shape, dimension=1)
        xp = jnp.where(col + k * tk < hw, xp, 0.0)

    acc_ref[...] += jnp.sum(xp, axis=-1, keepdims=True)

    @pl.when(k == pl.num_programs(1) - 1)
    def _finalize():
        m = acc_ref[...] * inv_hw                   # (TM, 1) mean over H*W
        if int_p is not None:
            r = _int_root(m, int_p)
        else:
            r = jnp.exp(s_ref[1] * jnp.log(m))
        # Lane-dense writeback: (TM, 1) -> (1, TM) -> (1, 1, TM).  The XLU
        # relayout is TM elements per row tile — negligible vs. the stream.
        o_ref[...] = jnp.transpose(r).reshape(o_ref.shape).astype(o_ref.dtype)


def gem_pallas(x, p, eps=1e-6, *, static_p=None, bf16_compute=True,
               target_block_bytes=8 * 1024 * 1024, max_tk=8192):
    """x: (N, C, H, W); p: (1,) array (trained param) or Python number.

    static_p: optional Python number hint for the exponent; when it is a small
    integer the kernel uses the VPU multiply fast path (caller guarantees it
    matches the runtime value of p, as with the GeM default p=3).
    """
    N, C, H, W = x.shape
    rows = N * C
    hw = H * W
    x2 = x.reshape(rows, hw)

    itemsize = jnp.dtype(x2.dtype).itemsize
    sub = 16 if itemsize == 2 else 8                 # sublane granularity

    # --- spatial (lane) tiling: bounds VMEM for arbitrarily large H*W --------
    TK = hw if hw <= max_tk else max_tk              # full extent or mult. of 128
    hw_tiles = pl.cdiv(hw, TK)

    # --- row (sublane) tiling: ~target_block_bytes per streamed block --------
    row_bytes_vmem = _round_up(TK, 128) * itemsize   # lanes pad to 128 in VMEM
    tm_cap = max(sub, (target_block_bytes // row_bytes_vmem) // sub * sub)
    tm_cap = min(tm_cap, 8192)                       # keep (TM,1) accumulator small
    if rows <= tm_cap:
        if rows > sub:
            # >= 2 row tiles so v7x's two TensorCores both get work.
            TM = min(tm_cap, _round_up(pl.cdiv(rows, 2), sub))
        else:
            TM = rows                                # full extent (tiny problems)
    else:
        TM = tm_cap
    row_tiles = pl.cdiv(rows, TM)                    # partial tail block; no jnp.pad

    int_p = _static_exponent(p, static_p)

    # SMEM scalars [p, 1/p]; only read on the general path.
    p_arr = jnp.asarray(p, dtype=jnp.float32).reshape(-1)[:1]
    scalars = jnp.concatenate([p_arr, 1.0 / p_arr])

    kernel = functools.partial(
        _gem_kernel, eps=float(eps), int_p=int_p, hw=hw, tk=TK,
        inv_hw=1.0 / float(hw), bf16_compute=bool(bf16_compute))

    out_dtype = x.dtype
    cost = pl.CostEstimate(
        flops=int(4 * rows * hw + 2 * rows),
        transcendentals=int((0 if int_p is not None else 2 * rows * hw) + 2 * rows),
        bytes_accessed=int(rows * hw * itemsize
                           + rows * jnp.dtype(out_dtype).itemsize),
    )

    out = pl.pallas_call(
        kernel,
        out_shape=jax.ShapeDtypeStruct((row_tiles, 1, TM), out_dtype),
        grid=(row_tiles, hw_tiles),
        in_specs=[
            pl.BlockSpec(memory_space=pltpu.MemorySpace.SMEM),        # [p, 1/p]
            pl.BlockSpec((TM, TK), lambda i, k: (i, k)),              # x block
        ],
        out_specs=pl.BlockSpec((1, 1, TM), lambda i, k: (i, 0, 0)),   # lane-dense
        scratch_shapes=[pltpu.VMEM((TM, 1), jnp.float32)],
        compiler_params=pltpu.CompilerParams(
            dimension_semantics=("parallel", "arbitrary"),
            vmem_limit_bytes=28 * 1024 * 1024,
        ),
        cost_estimate=cost,
    )(scalars, x2)

    return out.reshape(-1)[:rows].reshape(N, C, 1, 1)


def gem_ref(x, p, eps=1e-6):
    """Pure-JAX reference matching the torch semantics."""
    pv = jnp.asarray(p, jnp.float32).reshape(-1)[0]
    xp = jnp.power(jnp.maximum(x.astype(jnp.float32), eps), pv)
    m = jnp.mean(xp, axis=(-2, -1), keepdims=True)
    return jnp.power(m, 1.0 / pv)


if __name__ == "__main__":
    key = jax.random.PRNGKey(0)
    N, C, H, W = 2, 4, 16, 16
    x = jax.random.normal(key, (N, C, H, W), dtype=jnp.float32)

    # GeM.__init__: self.p = Parameter(torch.ones(1) * 3) -> deterministic init.
    p = jnp.ones((1,), dtype=jnp.float32) * 3.0
    eps = 1e-6

    ref = gem_ref(x, p, eps)

    # Fast path: static integer exponent -> pure-VPU pow chain.
    out_fast = jax.block_until_ready(gem_pallas(x, p, eps, static_p=3))
    # General path: exponent read from SMEM at runtime (trained-parameter case).
    out_gen = jax.block_until_ready(gem_pallas(x, p, eps))

    assert out_fast.shape == (N, C, 1, 1), out_fast.shape
    assert out_gen.shape == (N, C, 1, 1), out_gen.shape
    assert jnp.allclose(out_fast, ref, rtol=1e-4, atol=1e-6), (
        f"fast path max abs diff = {jnp.max(jnp.abs(out_fast - ref))}")
    assert jnp.allclose(out_gen, ref, rtol=1e-4, atol=1e-6), (
        f"general path max abs diff = {jnp.max(jnp.abs(out_gen - ref))}")

    print("KERNEL_OK")
</pallas_src>

<mosaic_0001>
module attributes {stable_mosaic.version = 11 : i64} {
  func.func @_gem_kernel(%arg0: i32, %arg1: i32, %arg2: memref<2xf32, #tpu.memory_space<smem>>, %arg3: memref<8x256xf32, #tpu.memory_space<vmem>>, %arg4: memref<1x1x8xf32, #tpu.memory_space<vmem>>, %arg5: memref<8x1xf32, #tpu.memory_space<vmem>>) attributes {dimension_semantics = [#tpu.dimension_semantics<parallel>, #tpu.dimension_semantics<arbitrary>], iteration_bounds = array<i64: 1, 1>, scalar_prefetch = 0 : i64, scratch_operands = 1 : i64, tpu.core_type = #tpu.core_type<tc>, window_params = [{transform_indices = @transform_0, window_bounds = array<i64: 2>}, {transform_indices = @transform_1, window_bounds = array<i64: 8, 256>}, {transform_indices = @transform_2, window_bounds = array<i64: 1, 1, 8>}]} {
    %c0_i32 = arith.constant 0 : i32
    %0 = arith.cmpi eq, %arg1, %c0_i32 : i32
    %1 = arith.extui %0 : i1 to i32
    %c0_i32_0 = arith.constant 0 : i32
    %2 = arith.cmpi ne, %1, %c0_i32_0 : i32
    scf.if %2 {
      %cst_9 = arith.constant 0.000000e+00 : f32
      %16 = vector.broadcast %cst_9 : f32 to vector<8x1xf32>
      %c0_10 = arith.constant 0 : index
      %c0_11 = arith.constant 0 : index
      %17 = vector.load %arg5[%c0_10, %c0_11] : memref<8x1xf32, #tpu.memory_space<vmem>>, vector<8x1xf32>
      tpu.vector_store %arg5[%c0_10, %c0_11], %16 {strides = array<i32>} : memref<8x1xf32, #tpu.memory_space<vmem>>, vector<8x1xf32>,
    } else {
    }
    %c0 = arith.constant 0 : index
    %c0_1 = arith.constant 0 : index
    %3 = vector.load %arg3[%c0, %c0_1] : memref<8x256xf32, #tpu.memory_space<vmem>>, vector<8x256xf32>
    %cst = arith.constant 9.99999997E-7 : f32
    %4 = vector.broadcast %cst : f32 to vector<8x256xf32>
    %5 = arith.maximumf %3, %4 : vector<8x256xf32>
    %6 = arith.mulf %5, %5 : vector<8x256xf32>
    %7 = arith.mulf %5, %6 : vector<8x256xf32>
    %c0_2 = arith.constant 0 : index
    %c0_3 = arith.constant 0 : index
    %8 = vector.load %arg5[%c0_2, %c0_3] : memref<8x1xf32, #tpu.memory_space<vmem>>, vector<8x1xf32>
    %cst_4 = arith.constant dense<0.000000e+00> : vector<8xf32>
    %9 = vector.multi_reduction <add>, %7, %cst_4 [1] : vector<8x256xf32> to vector<8xf32>
    %10 = vector.shape_cast %9 : vector<8xf32> to vector<8x1xf32>
    %11 = arith.addf %8, %10 : vector<8x1xf32>
    %c0_5 = arith.constant 0 : index
    %c0_6 = arith.constant 0 : index
    %12 = vector.load %arg5[%c0_5, %c0_6] : memref<8x1xf32, #tpu.memory_space<vmem>>, vector<8x1xf32>
    tpu.vector_store %arg5[%c0_5, %c0_6], %11 {strides = array<i32>} : memref<8x1xf32, #tpu.memory_space<vmem>>, vector<8x1xf32>,
    %c0_i32_7 = arith.constant 0 : i32
    %13 = arith.cmpi eq, %arg1, %c0_i32_7 : i32
    %14 = arith.extui %13 : i1 to i32
    %c0_i32_8 = arith.constant 0 : i32
    %15 = arith.cmpi ne, %14, %c0_i32_8 : i32
    scf.if %15 {
      %c0_9 = arith.constant 0 : index
      %c0_10 = arith.constant 0 : index
      %16 = vector.load %arg5[%c0_9, %c0_10] : memref<8x1xf32, #tpu.memory_space<vmem>>, vector<8x1xf32>
      %cst_11 = arith.constant 3.906250e-03 : f32
      %17 = vector.broadcast %cst_11 : f32 to vector<8x1xf32>
      %18 = arith.mulf %16, %17 : vector<8x1xf32>
      %19 = math.log %18 : vector<8x1xf32>
      %cst_12 = arith.constant 0.333333343 : f32
      %20 = vector.broadcast %cst_12 : f32 to vector<8x1xf32>
      %21 = arith.mulf %19, %20 : vector<8x1xf32>
      %22 = math.exp %21 : vector<8x1xf32>
      %23 = tpu.transpose %22, [1, 0] : vector<8x1xf32> -> vector<1x8xf32>
      %24 = vector.shape_cast %23 : vector<1x8xf32> to vector<1x1x8xf32>
      %c0_13 = arith.constant 0 : index
      %c0_14 = arith.constant 0 : index
      %c0_15 = arith.constant 0 : index
      %25 = vector.load %arg4[%c0_13, %c0_14, %c0_15] : memref<1x1x8xf32, #tpu.memory_space<vmem>>, vector<1x1x8xf32>
      tpu.vector_store %arg4[%c0_13, %c0_14, %c0_15], %24 {strides = array<i32>} : memref<1x1x8xf32, #tpu.memory_space<vmem>>, vector<1x1x8xf32>,
    } else {
    }
    return
  }
  func.func @transform_0(%arg0: i32, %arg1: i32) -> i32 {
    %c0_i32 = arith.constant 0 : i32
    %c0_i32_0 = arith.constant 0 : i32
    return %c0_i32 : i32
  }
  func.func @transform_1(%arg0: i32, %arg1: i32) -> (i32, i32) {
    %c0_i32 = arith.constant 0 : i32
    return %arg0, %arg1 : i32, i32
  }
  func.func @transform_2(%arg0: i32, %arg1: i32) -> (i32, i32, i32) {
    %c0_i32 = arith.constant 0 : i32
    %c0_i32_0 = arith.constant 0 : i32
    %c0_i32_1 = arith.constant 0 : i32
    return %arg0, %c0_i32, %c0_i32_0 : i32, i32, i32
  }
}

</mosaic_0001>

<llo_original>
// kernel: tpu_custom_call.1
$region0: #{tpu_custom_call.1}
  #allocation0 [shape = 'u32[]', space=smem, size = 0x4, offset = 0x4, fixed_abs, tag = 'smem constant byte address 0x4 - core index']
  #allocation1 [shape = 'u32[144,128]{1,0:T(1,128)}', space=vmem, size = 0x12000, scoped, tag = 'internal scratch']
  #allocation2 [shape = 'f32[8,1]{1,0:T(8,128)}', space=vmem, size = 0x1000, scoped, tag = 'scratch operand']
  %s0 = inlined_call_operand.hbm [shape: f32[2], index: 0, kind: input, shape index: {}]
  %s1 = inlined_call_operand.hbm [shape: f32[8,256], index: 1, kind: input, shape index: {}]
  %s2 = inlined_call_operand.hbm [shape: f32[1,1,8], index: 2, kind: output, shape index: {}]
  %s3 = sld [smem:[#allocation0]]
  $region34: #{tpu_custom_call.1} parent=0
    _
  %s5 = ssub.s32 1, %s3
  %s6 = scalar_select 0, %s5, %s3
  $region1: #{tpu_custom_call.1} parent=0
    #allocation3 [shape = 'u8[512]{0}', space=smem, size = 0x200, scoped, tag = 'input window, operand 0, single buffered']
    #allocation4 [shape = 's32[1]{0}', space=sflag, size = 0x4, scoped, tag = 'scoped memory for tpu_custom_call.1']
    #allocation5 [shape = 's32[1]{0}', space=sflag, size = 0x4, scoped, tag = 'scoped memory for tpu_custom_call.1']
    #allocation6 [shape = 's32[1]{0}', space=sflag, size = 0x4, scoped, tag = 'scoped memory for tpu_custom_call.1']
    #allocation7 [shape = 'u8[8192]{0}', space=vmem, size = 0x2000, scoped, tag = 'input window, operand 1, single buffered']
    #allocation8 [shape = 'u8[512]{0}', space=vmem, size = 0x400, scoped, tag = 'output window, operand 0, single buffered']
    %7 = vsyncpa [#allocation6], 0
    %8 = vsyncpa [#allocation4], 0
    %9 = vsyncpa [#allocation5], 0
    // Predicated region
    $region2: #{tpu_custom_call.1} parent=1 // pred_check
      _
    $region3: #{tpu_custom_call.1} parent=1 // pred_check_branch
      %11 = sbr.rel (0) target = $region5
    $region4: #{tpu_custom_call.1} parent=1 // pred_region
      %s13 = ssub.s32 16, 16
      %14 = vsyncadd [#allocation6], %s13
      %17 = dma.hbm_to_smem %s0, 16, [#allocation3], [#allocation6]
    $region5: #{tpu_custom_call.1} parent=1 // pred_fallthru
      _
    // Predicated region
    $region6: #{tpu_custom_call.1} parent=1 // pred_check
      _
    $region7: #{tpu_custom_call.1} parent=1 // pred_check_branch
      %19 = sbr.rel (0) target = $region9
    $region8: #{tpu_custom_call.1} parent=1 // pred_region
      %s21 = ssub.s32 256, 256
      %22 = vsyncadd [#allocation4], %s21
      %s24 = sshll.u32 [#allocation7], 4
      %s25 = int_to_ptr.vmem [resolvable:$true] %s24
      %27 = dma.hbm_to_vmem [thread:$0]  %s1, 256, %s25, [#allocation4]
    $region9: #{tpu_custom_call.1} parent=1 // pred_fallthru
      _
    // Predicated region
    $region10: #{tpu_custom_call.1} parent=1 // pred_check
      _
    $region11: #{tpu_custom_call.1} parent=1 // pred_check_branch
      %29 = sbr.rel (0) target = $region13
    $region12: #{tpu_custom_call.1} parent=1 // pred_region
      %30 = dma.done [#allocation6], 16
    $region13: #{tpu_custom_call.1} parent=1 // pred_fallthru
      _
    // Predicated region
    $region14: #{tpu_custom_call.1} parent=1 // pred_check
      _
    $region15: #{tpu_custom_call.1} parent=1 // pred_check_branch
      %32 = sbr.rel (0) target = $region17
    $region16: #{tpu_custom_call.1} parent=1 // pred_region
      %33 = dma.done [#allocation4], 256
    $region17: #{tpu_custom_call.1} parent=1 // pred_fallthru
      _
    %34 = sfence
    %p35 = scmp.eq.s32.totalorder 0, 0
    // Predicated region
    $region18: #{tpu_custom_call.1} parent=1 // pred_check
      %p36 = pneg %p35
    $region19: #{tpu_custom_call.1} parent=1 // pred_check_branch
      %38 = sbr.rel (%p36) target = $region21
    $region20: #{tpu_custom_call.1} parent=1 // pred_region
      %vm39 = vcmask 7168
      %40 = vst.msk [vmem:[#allocation2] sm:$0xff] %vm39, 0.0
    $region21: #{tpu_custom_call.1} parent=1 // pred_fallthru
      _
    %v41 = vld [vmem:[#allocation7] sm:$0xff]
    %v42 = vld [vmem:[#allocation7 + $0x8] sm:$0xff]
    %v43 = vmax.f32 %v41, 1e-06
    %v44 = vmax.f32 %v42, 1e-06
    %v45 = vmul.f32 %v43, %v43
    %v46 = vmul.f32 %v44, %v44
    %v47 = vmul.f32 %v43, %v45
    %v48 = vmul.f32 %v44, %v46
    %v49 = vld [vmem:[#allocation2] sm:$0xff]
    %v50 = vadd.f32 %v47, %v48
    %51 = vadd.xlane.f32.xlu0 %v50
    %v52 = vpop.xlane.xlu0 %51
    %v53 = vadd.f32 %v49, %v52
    %vm54 = vcmask 7168
    %55 = vst.msk [vmem:[#allocation2] sm:$0xff] %vm54, %v53
    // Predicated region
    $region22: #{tpu_custom_call.1} parent=1 // pred_check
      %p56 = pneg %p35
    $region23: #{tpu_custom_call.1} parent=1 // pred_check_branch
      %58 = sbr.rel (%p56) target = $region25
    $region24: #{tpu_custom_call.1} parent=1 // pred_region
      %v59 = vld [vmem:[#allocation2] sm:$0xff]
      %v60 = vmul.f32 %v59, 0.00390625
      %v61 = vlog2.pop %v60
      %v62 = vmul.f32 %v61, 0.6931472
      %v63 = vmul.f32 %v62, 0.33333334
      %v64 = vmul.f32 %v63, 1.442695
      %v65 = vpow.pop %v64
      %66 = vxpose.xlu0.b32.start [1/16] %v65, 128
      %67 = vxpose.xlu0.b32.cont [2/16] 0.0, 128
      %68 = vxpose.xlu0.b32.cont [3/16] 0.0, 128
      %69 = vxpose.xlu0.b32.cont [4/16] 0.0, 128
      %70 = vxpose.xlu0.b32.cont [5/16] 0.0, 128
      %71 = vxpose.xlu0.b32.cont [6/16] 0.0, 128
      %72 = vxpose.xlu0.b32.cont [7/16] 0.0, 128
      %73 = vxpose.xlu0.b32.cont [8/16] 0.0, 128
      %74 = vxpose.xlu0.b32.cont [9/16] 0.0, 128
      %75 = vxpose.xlu0.b32.cont [10/16] 0.0, 128
      %76 = vxpose.xlu0.b32.cont [11/16] 0.0, 128
      %77 = vxpose.xlu0.b32.cont [12/16] 0.0, 128
      %78 = vxpose.xlu0.b32.cont [13/16] 0.0, 128
      %79 = vxpose.xlu0.b32.cont [14/16] 0.0, 128
      %80 = vxpose.xlu0.b32.cont [15/16] 0.0, 128
      %81 = vxpose.xlu0.b32.end [16/16] 0.0, 128
      %v82 = vpop.trf.xlu0
      %v83 = vpop.trf.xlu0
      %v84 = vpop.trf.xlu0
      %v85 = vpop.trf.xlu0
      %v86 = vpop.trf.xlu0
      %v87 = vpop.trf.xlu0
      %v88 = vpop.trf.xlu0
      %v89 = vpop.trf.xlu0
      %v90 = vpop.trf.xlu0
      %v91 = vpop.trf.xlu0
      %v92 = vpop.trf.xlu0
      %v93 = vpop.trf.xlu0
      %v94 = vpop.trf.xlu0
      %v95 = vpop.trf.xlu0
      %v96 = vpop.trf.xlu0
      %v97 = vpop.trf.xlu0
      %vm98 = vcmask 57344
      %99 = vst.msk [vmem:[#allocation8] sm:$0x1] %vm98, %v82
    $region25: #{tpu_custom_call.1} parent=1 // pred_fallthru
      _
    // Predicated region
    $region26: #{tpu_custom_call.1} parent=1 // pred_check
      _
    $region27: #{tpu_custom_call.1} parent=1 // pred_check_branch
      %101 = sbr.rel (0) target = $region29
    $region28: #{tpu_custom_call.1} parent=1 // pred_region
      %s103 = ssub.s32 16, 16
      %104 = vsyncadd [#allocation5], %s103
      %s106 = sshll.u32 [#allocation8], 4
      %s107 = int_to_ptr.vmem [resolvable:$true] %s106
      %109 = dma.vmem_to_hbm [thread:$0]  %s107, 16, %s2, [#allocation5]
    $region29: #{tpu_custom_call.1} parent=1 // pred_fallthru
      _
    // Predicated region
    $region30: #{tpu_custom_call.1} parent=1 // pred_check
      _
    $region31: #{tpu_custom_call.1} parent=1 // pred_check_branch
      %111 = sbr.rel (0) target = $region33
    $region32: #{tpu_custom_call.1} parent=1 // pred_region
      %112 = dma.done [#allocation5], 16
    $region33: #{tpu_custom_call.1} parent=1 // pred_fallthru
      _
    %113 = vsyncpa [#allocation4], 1
    %114 = vsyncpa [#allocation5], 1
    %115 = vsyncpa [#allocation6], 1

</llo_original>
